<compile_context>
chip_gen: v6e
topology: v6e:2x2x1
jax: 0.10.0
libtpu: 0.0.40
codegen_flags: <defaults>
</compile_context>

<pallas_src>
import functools  # noqa: F401  (kept for parity with common kernel scaffolding)

import jax
import jax.numpy as jnp
from jax.experimental import pallas as pl
from jax.experimental.pallas import tpu as pltpu


_NUM_TOKENS = 6  # nn.Embedding(6, embedding_dim)


def _round_up(x, m):
    return (x + m - 1) // m * m


def _dueling_kernel(state_ref, p_ref, tok_ref,
                    w1_ref, b1_ref,
                    w2_ref, b2_ref,
                    wh_ref, bh_ref,
                    wo_ref, bo_ref,
                    q_ref):
    """Fused one-hot embedding + MLP trunk + fused dueling heads (combine pre-folded)."""
    # ---- in-kernel one-hot of the token ids (bf16 replication matmul, 1 MXU pass) ----
    s = state_ref[...].astype(jnp.bfloat16)                                # (TB, D)
    s_rep = jnp.dot(s, p_ref[...], preferred_element_type=jnp.float32)     # (TB, 6*D)
    one_hot = jnp.where(jnp.abs(s_rep - tok_ref[...]) < 0.5, 1.0, 0.0)
    one_hot = one_hot.astype(jnp.bfloat16)

    # ---- fc1 (embedding folded into the weight) -> relu ----
    h = jnp.dot(one_hot, w1_ref[...], preferred_element_type=jnp.float32) + b1_ref[...]
    h = jnp.maximum(h, 0.0).astype(jnp.bfloat16)                           # (TB, 256)

    # ---- fc2 -> relu ----
    h = jnp.dot(h, w2_ref[...], preferred_element_type=jnp.float32) + b2_ref[...]
    h = jnp.maximum(h, 0.0).astype(jnp.bfloat16)                           # (TB, 128)

    # ---- fused head layer 1: [fc_value | fc_advantage] -> relu ----
    h = jnp.dot(h, wh_ref[...], preferred_element_type=jnp.float32) + bh_ref[...]
    h = jnp.maximum(h, 0.0).astype(jnp.bfloat16)                           # (TB, 128) = [hv | ha]

    # ---- fused head layer 2: dueling combine already folded into wo/bo ----
    q = jnp.dot(h, wo_ref[...], preferred_element_type=jnp.float32) + bo_ref[...]
    q_ref[...] = q.astype(q_ref.dtype)                                      # lanes [:A] = Q, rest 0


def prepare_params(params, input_dims, n_actions, embedding_dim=32):
    """One-time weight prep: fold embedding into fc1, fuse heads, fold dueling combine, cast bf16."""
    D, E = input_dims, embedding_dim
    A = n_actions
    assert A <= 127, "lane-dense output assumes n_actions <= 127"

    emb = params["embedding"].astype(jnp.float32)                 # (6, E)
    w1 = params["w1"].astype(jnp.float32)                         # (D*E, 256)
    # W1_fold[t*D + d, :] = emb[t] @ w1[d*E:(d+1)*E, :]
    w1f = jnp.einsum("te,deh->tdh", emb, w1.reshape(D, E, 256)).reshape(_NUM_TOKENS * D, 256)

    # head hidden split derived from the params (no hard-coded 64)
    Hv = params["wv1"].shape[1]
    Ha = params["wa1"].shape[1]
    HID = Hv + Ha
    assert HID <= 128, "fused head assumes value+advantage hidden widths fit in 128 lanes"

    # fused head layer 1: [wv1 | wa1], zero-padded to 128 lanes
    wh = jnp.zeros((128, 128), jnp.float32)
    wh = wh.at[:, :Hv].set(params["wv1"].astype(jnp.float32))
    wh = wh.at[:, Hv:HID].set(params["wa1"].astype(jnp.float32))
    bh = jnp.zeros((1, 128), jnp.float32)
    bh = bh.at[0, :Hv].set(params["bv1"][0].astype(jnp.float32))
    bh = bh.at[0, Hv:HID].set(params["ba1"][0].astype(jnp.float32))

    # fused head layer 2 with the dueling combine folded in:
    #   Q_a = V + A_a - mean(A)
    #   wo[:Hv, a]    = wv2[:, 0]
    #   wo[Hv:HID, a] = wa2[:, a] - mean_a(wa2)
    #   bo[a]         = bv2 + ba2[a] - mean_a(ba2)
    wv2 = params["wv2"].astype(jnp.float32)                       # (Hv, 1)
    wa2 = params["wa2"].astype(jnp.float32)                       # (Ha, A)
    bv2 = params["bv2"].astype(jnp.float32)                       # (1, 1)
    ba2 = params["ba2"].astype(jnp.float32)                       # (1, A)
    wo = jnp.zeros((128, 128), jnp.float32)
    wo = wo.at[:Hv, :A].set(jnp.tile(wv2, (1, A)))
    wo = wo.at[Hv:HID, :A].set(wa2 - wa2.mean(axis=1, keepdims=True))
    bo = jnp.zeros((1, 128), jnp.float32)
    bo = bo.at[0, :A].set(bv2[0, 0] + ba2[0] - ba2.mean())

    # replication matrix P[d, t*D + d] = 1  and the token-value row per lane
    p_rep = jnp.tile(jnp.eye(D, dtype=jnp.float32), (1, _NUM_TOKENS))            # (D, 6D)
    tok = jnp.repeat(jnp.arange(_NUM_TOKENS, dtype=jnp.float32), D)[None, :]     # (1, 6D)

    return {
        "p_rep": p_rep.astype(jnp.bfloat16),   # bf16 -> single-pass MXU replication
        "tok": tok,                            # f32 compare against f32 accumulator (exact)
        "w1f": w1f.astype(jnp.bfloat16),
        "b1": params["b1"].astype(jnp.float32),
        "w2": params["w2"].astype(jnp.bfloat16),
        "b2": params["b2"].astype(jnp.float32),
        "wh": wh.astype(jnp.bfloat16),
        "bh": bh,
        "wo": wo.astype(jnp.bfloat16),
        "bo": bo,
        "n_actions": n_actions,
        "input_dims": D,
    }


def dueling_q_forward(state, kp, *, dense_output=True):
    """state: (B, input_dims) integer tokens in [0, 6).

    dense_output=True  -> (B, n_actions) Q values (module semantics).
    dense_output=False -> lane-dense padded (b_pad, 128) bf16 tile; Q values live in
                          lanes [:n_actions], rows [:B]  (avoids an extra HBM slice pass).
    """
    D = kp["input_dims"]
    A = kp["n_actions"]
    B = state.shape[0]

    # tile_b: multiple of 16 (bf16 sublane packing), cap 512; for moderate/large B
    # force >= 2 tiles so the parallel grid axis feeds both v7x TensorCores.
    cap = 512
    if B >= 32:
        tile_b = min(cap, _round_up(-(-B // 2), 16))
    else:
        tile_b = _round_up(max(B, 1), 16)
    b_pad = _round_up(B, tile_b)
    n_tiles = b_pad // tile_b

    state_i = state.astype(jnp.int32)
    if b_pad != B:
        state_i = jnp.pad(state_i, ((0, b_pad - B), (0, 0)))

    operands = (state_i, kp["p_rep"], kp["tok"], kp["w1f"], kp["b1"],
                kp["w2"], kp["b2"], kp["wh"], kp["bh"], kp["wo"], kp["bo"])

    def batch_spec(cols):
        return pl.BlockSpec((tile_b, cols), lambda i: (i, 0))

    def const_spec(shape):
        return pl.BlockSpec(shape, lambda i: (0, 0))

    in_specs = [batch_spec(D)] + [const_spec(op.shape) for op in operands[1:]]

    flops = 2 * b_pad * (D * _NUM_TOKENS * D          # one-hot replication matmul
                         + _NUM_TOKENS * D * 256      # fc1 (embedding folded)
                         + 256 * 128                  # fc2
                         + 128 * 128                  # fused head layer 1
                         + 128 * 128)                 # fused head layer 2 (+combine)
    weight_bytes = sum(int(op.size) * op.dtype.itemsize for op in operands[1:])
    bytes_accessed = b_pad * (D * 4 + 128 * 2) + weight_bytes

    q_pad = pl.pallas_call(
        _dueling_kernel,
        out_shape=jax.ShapeDtypeStruct((b_pad, 128), jnp.bfloat16),
        grid=(n_tiles,),
        in_specs=in_specs,
        out_specs=batch_spec(128),
        compiler_params=pltpu.CompilerParams(
            dimension_semantics=("parallel",)),
        cost_estimate=pl.CostEstimate(
            flops=flops, transcendentals=0, bytes_accessed=bytes_accessed),
    )(*operands)

    if dense_output:
        return q_pad[:B, :A]
    return q_pad


def init_params(key, input_dims, n_actions, embedding_dim=32):
    """Deterministic synthetic init mimicking PyTorch defaults
    (Linear: uniform +/- 1/sqrt(fan_in); Embedding ~ N(0,1))."""
    ks = jax.random.split(key, 13)

    def linear(kw, kb, fan_in, fan_out):
        bound = 1.0 / jnp.sqrt(fan_in)
        # stored as (in, out) == PyTorch weight.T
        w = jax.random.uniform(kw, (fan_in, fan_out), jnp.float32, -bound, bound)
        b = jax.random.uniform(kb, (1, fan_out), jnp.float32, -bound, bound)
        return w, b

    p = {}
    p["embedding"] = jax.random.normal(ks[0], (_NUM_TOKENS, embedding_dim), jnp.float32)
    p["w1"], p["b1"] = linear(ks[1], ks[2], input_dims * embedding_dim, 256)
    p["w2"], p["b2"] = linear(ks[3], ks[4], 256, 128)
    p["wv1"], p["bv1"] = linear(ks[5], ks[6], 128, 64)
    p["wv2"], p["bv2"] = linear(ks[7], ks[8], 64, 1)
    p["wa1"], p["ba1"] = linear(ks[9], ks[10], 128, 64)
    p["wa2"], p["ba2"] = linear(ks[11], ks[12], 64, n_actions)
    return p


def reference_forward(state, params):
    """Pure-JAX f32 reference of the PyTorch forward (unfused weights)."""
    x = jnp.take(params["embedding"], state.astype(jnp.int32), axis=0)
    x = x.reshape(state.shape[0], -1)
    x = jax.nn.relu(x @ params["w1"] + params["b1"])
    x = jax.nn.relu(x @ params["w2"] + params["b2"])
    val = jax.nn.relu(x @ params["wv1"] + params["bv1"]) @ params["wv2"] + params["bv2"]
    adv = jax.nn.relu(x @ params["wa1"] + params["ba1"]) @ params["wa2"] + params["ba2"]
    return val + (adv - adv.mean(axis=1, keepdims=True))


if __name__ == "__main__":
    key = jax.random.PRNGKey(0)
    k_state, k_params = jax.random.split(key)

    batch = 2
    input_dims = 8          # number of discrete tokens per state
    n_actions = 4
    embedding_dim = 32

    state = jax.random.randint(k_state, (batch, input_dims), 0, _NUM_TOKENS, dtype=jnp.int32)
    params = init_params(k_params, input_dims, n_actions, embedding_dim)
    kparams = prepare_params(params, input_dims, n_actions, embedding_dim)

    q = dueling_q_forward(state, kparams)        # (batch, n_actions), bf16
    q = jax.block_until_ready(q)

    q_ref = reference_forward(state, params)
    assert q.shape == (batch, n_actions)
    # bf16 MXU inputs + bf16 output -> loosened tolerance vs. the f32 reference
    assert jnp.allclose(q.astype(jnp.float32), q_ref, atol=3e-2, rtol=3e-2), (q, q_ref)

    print("KERNEL_OK")
</pallas_src>

<mosaic_0001>
module attributes {stable_mosaic.version = 11 : i64} {
  func.func @_dueling_kernel(%arg0: i32, %arg1: memref<16x8xi32, #tpu.memory_space<vmem>>, %arg2: memref<8x48xbf16, #tpu.memory_space<vmem>>, %arg3: memref<1x48xf32, #tpu.memory_space<vmem>>, %arg4: memref<48x256xbf16, #tpu.memory_space<vmem>>, %arg5: memref<1x256xf32, #tpu.memory_space<vmem>>, %arg6: memref<256x128xbf16, #tpu.memory_space<vmem>>, %arg7: memref<1x128xf32, #tpu.memory_space<vmem>>, %arg8: memref<128x128xbf16, #tpu.memory_space<vmem>>, %arg9: memref<1x128xf32, #tpu.memory_space<vmem>>, %arg10: memref<128x128xbf16, #tpu.memory_space<vmem>>, %arg11: memref<1x128xf32, #tpu.memory_space<vmem>>, %arg12: memref<16x128xbf16, #tpu.memory_space<vmem>>) attributes {dimension_semantics = [#tpu.dimension_semantics<parallel>], iteration_bounds = array<i64: 1>, scalar_prefetch = 0 : i64, scratch_operands = 0 : i64, tpu.core_type = #tpu.core_type<tc>, window_params = [{transform_indices = @transform_0, window_bounds = array<i64: 16, 8>}, {pipeline_mode = #tpu.pipeline_mode<synchronous>, transform_indices = @transform_1, window_bounds = array<i64: 8, 48>}, {pipeline_mode = #tpu.pipeline_mode<synchronous>, transform_indices = @transform_2, window_bounds = array<i64: 1, 48>}, {pipeline_mode = #tpu.pipeline_mode<synchronous>, transform_indices = @transform_3, window_bounds = array<i64: 48, 256>}, {pipeline_mode = #tpu.pipeline_mode<synchronous>, transform_indices = @transform_4, window_bounds = array<i64: 1, 256>}, {pipeline_mode = #tpu.pipeline_mode<synchronous>, transform_indices = @transform_5, window_bounds = array<i64: 256, 128>}, {pipeline_mode = #tpu.pipeline_mode<synchronous>, transform_indices = @transform_6, window_bounds = array<i64: 1, 128>}, {pipeline_mode = #tpu.pipeline_mode<synchronous>, transform_indices = @transform_7, window_bounds = array<i64: 128, 128>}, {pipeline_mode = #tpu.pipeline_mode<synchronous>, transform_indices = @transform_8, window_bounds = array<i64: 1, 128>}, {pipeline_mode = #tpu.pipeline_mode<synchronous>, transform_indices = @transform_9, window_bounds = array<i64: 128, 128>}, {pipeline_mode = #tpu.pipeline_mode<synchronous>, transform_indices = @transform_10, window_bounds = array<i64: 1, 128>}, {transform_indices = @transform_11, window_bounds = array<i64: 16, 128>}]} {
    %c0 = arith.constant 0 : index
    %c0_0 = arith.constant 0 : index
    %0 = vector.load %arg1[%c0, %c0_0] : memref<16x8xi32, #tpu.memory_space<vmem>>, vector<16x8xi32>
    %1 = arith.sitofp %0 : vector<16x8xi32> to vector<16x8xbf16>
    %c0_1 = arith.constant 0 : index
    %c0_2 = arith.constant 0 : index
    %2 = vector.load %arg2[%c0_1, %c0_2] : memref<8x48xbf16, #tpu.memory_space<vmem>>, vector<8x48xbf16>
    %cst = arith.constant dense<0.000000e+00> : vector<16x48xf32>
    %3 = tpu.matmul %1, %2, %cst {dimension_numbers = #tpu.dot_dimension_numbers<[1], [0], [0], [1], [0, 0, 1, 1], [], []>} : vector<16x8xbf16>, vector<8x48xbf16>, vector<16x48xf32> -> vector<16x48xf32>
    %c0_3 = arith.constant 0 : index
    %c0_4 = arith.constant 0 : index
    %4 = vector.load %arg3[%c0_3, %c0_4] : memref<1x48xf32, #tpu.memory_space<vmem>>, vector<1x48xf32>
    %5 = vector.broadcast %4 : vector<1x48xf32> to vector<16x48xf32>
    %6 = arith.subf %3, %5 : vector<16x48xf32>
    %7 = math.absf %6 : vector<16x48xf32>
    %cst_5 = arith.constant 5.000000e-01 : f32
    %8 = vector.broadcast %cst_5 : f32 to vector<16x48xf32>
    %9 = arith.cmpf olt, %7, %8 : vector<16x48xf32>
    %cst_6 = arith.constant 1.000000e+00 : f32
    %cst_7 = arith.constant 0.000000e+00 : f32
    %10 = vector.broadcast %cst_6 : f32 to vector<16x48xf32>
    %11 = vector.broadcast %cst_7 : f32 to vector<16x48xf32>
    %12 = arith.select %9, %10, %11 : vector<16x48xi1>, vector<16x48xf32>
    %13 = arith.truncf %12 : vector<16x48xf32> to vector<16x48xbf16>
    %c0_8 = arith.constant 0 : index
    %c0_9 = arith.constant 0 : index
    %14 = vector.load %arg4[%c0_8, %c0_9] : memref<48x256xbf16, #tpu.memory_space<vmem>>, vector<48x256xbf16>
    %cst_10 = arith.constant dense<0.000000e+00> : vector<16x256xf32>
    %15 = tpu.matmul %13, %14, %cst_10 {dimension_numbers = #tpu.dot_dimension_numbers<[1], [0], [0], [1], [0, 0, 1, 1], [], []>} : vector<16x48xbf16>, vector<48x256xbf16>, vector<16x256xf32> -> vector<16x256xf32>
    %c0_11 = arith.constant 0 : index
    %c0_12 = arith.constant 0 : index
    %16 = vector.load %arg5[%c0_11, %c0_12] : memref<1x256xf32, #tpu.memory_space<vmem>>, vector<1x256xf32>
    %17 = vector.broadcast %16 : vector<1x256xf32> to vector<16x256xf32>
    %18 = arith.addf %15, %17 : vector<16x256xf32>
    %cst_13 = arith.constant 0.000000e+00 : f32
    %19 = vector.broadcast %cst_13 : f32 to vector<16x256xf32>
    %20 = arith.maximumf %18, %19 : vector<16x256xf32>
    %21 = arith.truncf %20 : vector<16x256xf32> to vector<16x256xbf16>
    %c0_14 = arith.constant 0 : index
    %c0_15 = arith.constant 0 : index
    %22 = vector.load %arg6[%c0_14, %c0_15] : memref<256x128xbf16, #tpu.memory_space<vmem>>, vector<256x128xbf16>
    %cst_16 = arith.constant dense<0.000000e+00> : vector<16x128xf32>
    %23 = tpu.matmul %21, %22, %cst_16 {dimension_numbers = #tpu.dot_dimension_numbers<[1], [0], [0], [1], [0, 0, 1, 1], [], []>} : vector<16x256xbf16>, vector<256x128xbf16>, vector<16x128xf32> -> vector<16x128xf32>
    %c0_17 = arith.constant 0 : index
    %c0_18 = arith.constant 0 : index
    %24 = vector.load %arg7[%c0_17, %c0_18] : memref<1x128xf32, #tpu.memory_space<vmem>>, vector<1x128xf32>
    %25 = vector.broadcast %24 : vector<1x128xf32> to vector<16x128xf32>
    %26 = arith.addf %23, %25 : vector<16x128xf32>
    %cst_19 = arith.constant 0.000000e+00 : f32
    %27 = vector.broadcast %cst_19 : f32 to vector<16x128xf32>
    %28 = arith.maximumf %26, %27 : vector<16x128xf32>
    %29 = arith.truncf %28 : vector<16x128xf32> to vector<16x128xbf16>
    %c0_20 = arith.constant 0 : index
    %c0_21 = arith.constant 0 : index
    %30 = vector.load %arg8[%c0_20, %c0_21] : memref<128x128xbf16, #tpu.memory_space<vmem>>, vector<128x128xbf16>
    %cst_22 = arith.constant dense<0.000000e+00> : vector<16x128xf32>
    %31 = tpu.matmul %29, %30, %cst_22 {dimension_numbers = #tpu.dot_dimension_numbers<[1], [0], [0], [1], [0, 0, 1, 1], [], []>} : vector<16x128xbf16>, vector<128x128xbf16>, vector<16x128xf32> -> vector<16x128xf32>
    %c0_23 = arith.constant 0 : index
    %c0_24 = arith.constant 0 : index
    %32 = vector.load %arg9[%c0_23, %c0_24] : memref<1x128xf32, #tpu.memory_space<vmem>>, vector<1x128xf32>
    %33 = vector.broadcast %32 : vector<1x128xf32> to vector<16x128xf32>
    %34 = arith.addf %31, %33 : vector<16x128xf32>
    %cst_25 = arith.constant 0.000000e+00 : f32
    %35 = vector.broadcast %cst_25 : f32 to vector<16x128xf32>
    %36 = arith.maximumf %34, %35 : vector<16x128xf32>
    %37 = arith.truncf %36 : vector<16x128xf32> to vector<16x128xbf16>
    %c0_26 = arith.constant 0 : index
    %c0_27 = arith.constant 0 : index
    %38 = vector.load %arg10[%c0_26, %c0_27] : memref<128x128xbf16, #tpu.memory_space<vmem>>, vector<128x128xbf16>
    %cst_28 = arith.constant dense<0.000000e+00> : vector<16x128xf32>
    %39 = tpu.matmul %37, %38, %cst_28 {dimension_numbers = #tpu.dot_dimension_numbers<[1], [0], [0], [1], [0, 0, 1, 1], [], []>} : vector<16x128xbf16>, vector<128x128xbf16>, vector<16x128xf32> -> vector<16x128xf32>
    %c0_29 = arith.constant 0 : index
    %c0_30 = arith.constant 0 : index
    %40 = vector.load %arg11[%c0_29, %c0_30] : memref<1x128xf32, #tpu.memory_space<vmem>>, vector<1x128xf32>
    %41 = vector.broadcast %40 : vector<1x128xf32> to vector<16x128xf32>
    %42 = arith.addf %39, %41 : vector<16x128xf32>
    %43 = arith.truncf %42 : vector<16x128xf32> to vector<16x128xbf16>
    %c0_31 = arith.constant 0 : index
    %c0_32 = arith.constant 0 : index
    %44 = vector.load %arg12[%c0_31, %c0_32] : memref<16x128xbf16, #tpu.memory_space<vmem>>, vector<16x128xbf16>
    tpu.vector_store %arg12[%c0_31, %c0_32], %43 {strides = array<i32>} : memref<16x128xbf16, #tpu.memory_space<vmem>>, vector<16x128xbf16>,
    return
  }
  func.func @transform_0(%arg0: i32) -> (i32, i32) {
    %c0_i32 = arith.constant 0 : i32
    %c0_i32_0 = arith.constant 0 : i32
    return %arg0, %c0_i32 : i32, i32
  }
  func.func @transform_1(%arg0: i32) -> (i32, i32) {
    %c0_i32 = arith.constant 0 : i32
    %c0_i32_0 = arith.constant 0 : i32
    %c0_i32_1 = arith.constant 0 : i32
    return %c0_i32, %c0_i32_0 : i32, i32
  }
  func.func @transform_2(%arg0: i32) -> (i32, i32) {
    %c0_i32 = arith.constant 0 : i32
    %c0_i32_0 = arith.constant 0 : i32
    %c0_i32_1 = arith.constant 0 : i32
    return %c0_i32, %c0_i32_0 : i32, i32
  }
  func.func @transform_3(%arg0: i32) -> (i32, i32) {
    %c0_i32 = arith.constant 0 : i32
    %c0_i32_0 = arith.constant 0 : i32
    %c0_i32_1 = arith.constant 0 : i32
    return %c0_i32, %c0_i32_0 : i32, i32
  }
  func.func @transform_4(%arg0: i32) -> (i32, i32) {
    %c0_i32 = arith.constant 0 : i32
    %c0_i32_0 = arith.constant 0 : i32
    %c0_i32_1 = arith.constant 0 : i32
    return %c0_i32, %c0_i32_0 : i32, i32
  }
  func.func @transform_5(%arg0: i32) -> (i32, i32) {
    %c0_i32 = arith.constant 0 : i32
    %c0_i32_0 = arith.constant 0 : i32
    %c0_i32_1 = arith.constant 0 : i32
    return %c0_i32, %c0_i32_0 : i32, i32
  }
  func.func @transform_6(%arg0: i32) -> (i32, i32) {
    %c0_i32 = arith.constant 0 : i32
    %c0_i32_0 = arith.constant 0 : i32
    %c0_i32_1 = arith.constant 0 : i32
    return %c0_i32, %c0_i32_0 : i32, i32
  }
  func.func @transform_7(%arg0: i32) -> (i32, i32) {
    %c0_i32 = arith.constant 0 : i32
    %c0_i32_0 = arith.constant 0 : i32
    %c0_i32_1 = arith.constant 0 : i32
    return %c0_i32, %c0_i32_0 : i32, i32
  }
  func.func @transform_8(%arg0: i32) -> (i32, i32) {
    %c0_i32 = arith.constant 0 : i32
    %c0_i32_0 = arith.constant 0 : i32
    %c0_i32_1 = arith.constant 0 : i32
    return %c0_i32, %c0_i32_0 : i32, i32
  }
  func.func @transform_9(%arg0: i32) -> (i32, i32) {
    %c0_i32 = arith.constant 0 : i32
    %c0_i32_0 = arith.constant 0 : i32
    %c0_i32_1 = arith.constant 0 : i32
    return %c0_i32, %c0_i32_0 : i32, i32
  }
  func.func @transform_10(%arg0: i32) -> (i32, i32) {
    %c0_i32 = arith.constant 0 : i32
    %c0_i32_0 = arith.constant 0 : i32
    %c0_i32_1 = arith.constant 0 : i32
    return %c0_i32, %c0_i32_0 : i32, i32
  }
  func.func @transform_11(%arg0: i32) -> (i32, i32) {
    %c0_i32 = arith.constant 0 : i32
    %c0_i32_0 = arith.constant 0 : i32
    return %arg0, %c0_i32 : i32, i32
  }
}

</mosaic_0001>

<llo_original>
// kernel: tpu_custom_call.1
$region0: #{tpu_custom_call.1}
  #allocation0 [shape = 'u32[]', space=smem, size = 0x4, offset = 0x4, fixed_abs, tag = 'smem constant byte address 0x4 - core index']
  #allocation1 [shape = 'u32[144,128]{1,0:T(1,128)}', space=vmem, size = 0x12000, scoped, tag = 'internal scratch']
  %s0 = inlined_call_operand.vmem [shape: s32[16,8], index: 0, kind: input, shape index: {}]
  %s1 = inlined_call_operand.vmem [shape: bf16[8,48], index: 1, kind: input, shape index: {}]
  %s2 = inlined_call_operand.vmem [shape: f32[1,48], index: 2, kind: input, shape index: {}]
  %s3 = inlined_call_operand.hbm [shape: bf16[48,256], index: 3, kind: input, shape index: {}]
  %s4 = inlined_call_operand.vmem [shape: f32[1,256], index: 4, kind: input, shape index: {}]
  %s5 = inlined_call_operand.hbm [shape: bf16[256,128], index: 5, kind: input, shape index: {}]
  %s6 = inlined_call_operand.vmem [shape: f32[1,128], index: 6, kind: input, shape index: {}]
  %s7 = inlined_call_operand.hbm [shape: bf16[128,128], index: 7, kind: input, shape index: {}]
  %s8 = inlined_call_operand.vmem [shape: f32[1,128], index: 8, kind: input, shape index: {}]
  %s9 = inlined_call_operand.hbm [shape: bf16[128,128], index: 9, kind: input, shape index: {}]
  %s10 = inlined_call_operand.vmem [shape: f32[1,128], index: 10, kind: input, shape index: {}]
  %s11 = inlined_call_operand.hbm [shape: bf16[16,128], index: 11, kind: output, shape index: {}]
  %s12 = sld [smem:[#allocation0]]
  $region70: #{tpu_custom_call.1} parent=0
    _
  %s14 = ssub.s32 1, %s12
  %s15 = scalar_select 0, %s14, %s12
  $region1: #{tpu_custom_call.1} parent=0
    #allocation2 [shape = 'u8[24576]{0}', space=vmem, size = 0x6000, scoped, tag = 'input window, operand 3, single buffered']
    #allocation3 [shape = 's32[1]{0}', space=sflag, size = 0x4, scoped, tag = 'scoped memory for tpu_custom_call.1']
    #allocation4 [shape = 's32[1]{0}', space=sflag, size = 0x4, scoped, tag = 'scoped memory for tpu_custom_call.1']
    #allocation5 [shape = 'u8[65536]{0}', space=vmem, size = 0x10000, scoped, tag = 'input window, operand 5, single buffered']
    #allocation6 [shape = 's32[1]{0}', space=sflag, size = 0x4, scoped, tag = 'scoped memory for tpu_custom_call.1']
    #allocation7 [shape = 'u8[32768]{0}', space=vmem, size = 0x8000, scoped, tag = 'input window, operand 7, single buffered']
    #allocation8 [shape = 'u8[32768]{0}', space=vmem, size = 0x8000, scoped, tag = 'input window, operand 9, single buffered']
    #allocation9 [shape = 's32[1]{0}', space=sflag, size = 0x4, scoped, tag = 'scoped memory for tpu_custom_call.1']
    #allocation10 [shape = 'u8[4096]{0}', space=vmem, size = 0x1000, scoped, tag = 'output window, operand 0, single buffered']
    %16 = vsyncpa [#allocation3], 0
    %17 = vsyncpa [#allocation6], 0
    %18 = vsyncpa [#allocation9], 0
    %19 = vsyncpa [#allocation4], 0
    // Predicated region
    $region2: #{tpu_custom_call.1} parent=1 // pred_check
      _
    $region3: #{tpu_custom_call.1} parent=1 // pred_check_branch
      %21 = sbr.rel (0) target = $region5
    $region4: #{tpu_custom_call.1} parent=1 // pred_region
      _
    $region5: #{tpu_custom_call.1} parent=1 // pred_fallthru
      _
    // Predicated region
    $region6: #{tpu_custom_call.1} parent=1 // pred_check
      _
    $region7: #{tpu_custom_call.1} parent=1 // pred_check_branch
      %23 = sbr.rel (0) target = $region9
    $region8: #{tpu_custom_call.1} parent=1 // pred_region
      _
    $region9: #{tpu_custom_call.1} parent=1 // pred_fallthru
      _
    // Predicated region
    $region10: #{tpu_custom_call.1} parent=1 // pred_check
      _
    $region11: #{tpu_custom_call.1} parent=1 // pred_check_branch
      %25 = sbr.rel (0) target = $region13
    $region12: #{tpu_custom_call.1} parent=1 // pred_region
      _
    $region13: #{tpu_custom_call.1} parent=1 // pred_fallthru
      _
    // Predicated region
    $region14: #{tpu_custom_call.1} parent=1 // pred_check
      _
    $region15: #{tpu_custom_call.1} parent=1 // pred_check_branch
      %27 = sbr.rel (0) target = $region17
    $region16: #{tpu_custom_call.1} parent=1 // pred_region
      %s29 = ssub.s32 768, 768
      %30 = vsyncadd [#allocation3], %s29
      %s31 = sshll.u32 [#allocation2], 4
      %s32 = int_to_ptr.vmem [resolvable:$true] %s31
      %37 = dma.hbm_to_vmem [thread:$0]  %s3, 768, %s32, [#allocation3], 128, 128, 8
    $region17: #{tpu_custom_call.1} parent=1 // pred_fallthru
      _
    // Predicated region
    $region18: #{tpu_custom_call.1} parent=1 // pred_check
      _
    $region19: #{tpu_custom_call.1} parent=1 // pred_check_branch
      %39 = sbr.rel (0) target = $region21
    $region20: #{tpu_custom_call.1} parent=1 // pred_region
      _
    $region21: #{tpu_custom_call.1} parent=1 // pred_fallthru
      _
    // Predicated region
    $region22: #{tpu_custom_call.1} parent=1 // pred_check
      _
    $region23: #{tpu_custom_call.1} parent=1 // pred_check_branch
      %41 = sbr.rel (0) target = $region25
    $region24: #{tpu_custom_call.1} parent=1 // pred_region
      %s43 = ssub.s32 2048, 2048
      %44 = vsyncadd [#allocation6], %s43
      %s45 = sshll.u32 [#allocation5], 4
      %s46 = int_to_ptr.vmem [resolvable:$true] %s45
      %51 = dma.hbm_to_vmem [thread:$0]  %s5, 2048, %s46, [#allocation6], 64, 64, 4
    $region25: #{tpu_custom_call.1} parent=1 // pred_fallthru
      _
    // Predicated region
    $region26: #{tpu_custom_call.1} parent=1 // pred_check
      _
    $region27: #{tpu_custom_call.1} parent=1 // pred_check_branch
      %53 = sbr.rel (0) target = $region29
    $region28: #{tpu_custom_call.1} parent=1 // pred_region
      _
    $region29: #{tpu_custom_call.1} parent=1 // pred_fallthru
      _
    // Predicated region
    $region30: #{tpu_custom_call.1} parent=1 // pred_check
      _
    $region31: #{tpu_custom_call.1} parent=1 // pred_check_branch
      %55 = sbr.rel (0) target = $region33
    $region32: #{tpu_custom_call.1} parent=1 // pred_region
      %s57 = ssub.s32 1024, 1024
      %58 = vsyncadd [#allocation6], %s57
      %s59 = sshll.u32 [#allocation7], 4
      %s60 = int_to_ptr.vmem [resolvable:$true] %s59
      %65 = dma.hbm_to_vmem [thread:$0]  %s7, 1024, %s60, [#allocation6], 64, 64, 4
    $region33: #{tpu_custom_call.1} parent=1 // pred_fallthru
      _
    // Predicated region
    $region34: #{tpu_custom_call.1} parent=1 // pred_check
      _
    $region35: #{tpu_custom_call.1} parent=1 // pred_check_branch
      %67 = sbr.rel (0) target = $region37
    $region36: #{tpu_custom_call.1} parent=1 // pred_region
      _
    $region37: #{tpu_custom_call.1} parent=1 // pred_fallthru
      _
    // Predicated region
    $region38: #{tpu_custom_call.1} parent=1 // pred_check
      _
    $region39: #{tpu_custom_call.1} parent=1 // pred_check_branch
      %69 = sbr.rel (0) target = $region41
    $region40: #{tpu_custom_call.1} parent=1 // pred_region
      %s71 = ssub.s32 1024, 1024
      %72 = vsyncadd [#allocation9], %s71
      %s73 = sshll.u32 [#allocation8], 4
      %s74 = int_to_ptr.vmem [resolvable:$true] %s73
      %79 = dma.hbm_to_vmem [thread:$0]  %s9, 1024, %s74, [#allocation9], 64, 64, 4
    $region41: #{tpu_custom_call.1} parent=1 // pred_fallthru
      _
    // Predicated region
    $region42: #{tpu_custom_call.1} parent=1 // pred_check
      _
    $region43: #{tpu_custom_call.1} parent=1 // pred_check_branch
      %81 = sbr.rel (0) target = $region45
    $region44: #{tpu_custom_call.1} parent=1 // pred_region
      _
    $region45: #{tpu_custom_call.1} parent=1 // pred_fallthru
      _
    // Predicated region
    $region46: #{tpu_custom_call.1} parent=1 // pred_check
      _
    $region47: #{tpu_custom_call.1} parent=1 // pred_check_branch
      %83 = sbr.rel (0) target = $region49
    $region48: #{tpu_custom_call.1} parent=1 // pred_region
      %84 = dma.done [#allocation3], 768
    $region49: #{tpu_custom_call.1} parent=1 // pred_fallthru
      _
    // Predicated region
    $region50: #{tpu_custom_call.1} parent=1 // pred_check
      _
    $region51: #{tpu_custom_call.1} parent=1 // pred_check_branch
      %86 = sbr.rel (0) target = $region53
    $region52: #{tpu_custom_call.1} parent=1 // pred_region
      %87 = dma.done [#allocation6], 2048
    $region53: #{tpu_custom_call.1} parent=1 // pred_fallthru
      _
    // Predicated region
    $region54: #{tpu_custom_call.1} parent=1 // pred_check
      _
    $region55: #{tpu_custom_call.1} parent=1 // pred_check_branch
      %89 = sbr.rel (0) target = $region57
    $region56: #{tpu_custom_call.1} parent=1 // pred_region
      %90 = dma.done [#allocation6], 1024
    $region57: #{tpu_custom_call.1} parent=1 // pred_fallthru
      _
    // Predicated region
    $region58: #{tpu_custom_call.1} parent=1 // pred_check
      _
    $region59: #{tpu_custom_call.1} parent=1 // pred_check_branch
      %92 = sbr.rel (0) target = $region61
    $region60: #{tpu_custom_call.1} parent=1 // pred_region
      %93 = dma.done [#allocation9], 1024
    $region61: #{tpu_custom_call.1} parent=1 // pred_fallthru
      _
    %v95 = vld [vmem:[%s0] sm:$0xff]
    %v96 = vld [vmem:[%s0 + $0x8] sm:$0xff]
    %v97 = vcvt.s32.f32 %v95
    %v98 = vcvt.s32.f32 %v96
    %v99 = vpack.c.bf16 %v98, %v97
    %v100 = vld [vmem:[%s1] sm:$0xf]
    %vm101 = vcmask 64512
    %v103 = vsel %vm101, %v99, 0
    %vm105 = vcmask 1043456
    %v107 = vsel %vm105, %v100, 0
    %109 = vmatprep.subr.bf16.mxu0 0
    %110 = vmatpush1.bf16.msra.mxu0 0
    %111 = vmatprep.subr.bf16.mxu0 0
    %112 = vmatpush1.bf16.msra.mxu0 0
    %113 = vmatprep.subr.bf16.mxu0 0
    %114 = vmatpush1.bf16.msra.mxu0 0
    %115 = vmatprep.subr.bf16.mxu0 0
    %116 = vmatpush1.bf16.msra.mxu0 0
    %117 = vmatprep.subr.bf16.mxu0 0
    %118 = vmatpush1.bf16.msra.mxu0 0
    %119 = vmatprep.subr.bf16.mxu0 0
    %120 = vmatpush1.bf16.msra.mxu0 0
    %121 = vmatprep.subr.bf16.mxu0 0
    %122 = vmatpush1.bf16.msra.mxu0 0
    %123 = vmatprep.subr.bf16.mxu0 0
    %124 = vmatpush1.bf16.msra.mxu0 %v107
    %125 = vmatprep.subr.bf16.mxu0 0
    %126 = vmatpush2.bf16.msra.mxu0 0
    %127 = vmatprep.subr.bf16.mxu0 0
    %128 = vmatpush2.bf16.msra.mxu0 0
    %129 = vmatprep.subr.bf16.mxu0 0
    %130 = vmatpush2.bf16.msra.mxu0 0
    %131 = vmatprep.subr.bf16.mxu0 0
    %132 = vmatpush2.bf16.msra.mxu0 0
    %133 = vmatprep.subr.bf16.mxu0 0
    %134 = vmatpush2.bf16.msra.mxu0 0
    %135 = vmatprep.subr.bf16.mxu0 0
    %136 = vmatpush2.bf16.msra.mxu0 0
    %137 = vmatprep.subr.bf16.mxu0 0
    %138 = vmatpush2.bf16.msra.mxu0 0
    %139 = vmatprep.subr.bf16.mxu0 0
    %140 = vmatpush2.bf16.msra.mxu0 0
    %141 = vmatprep.mubr.bf16.mxu0 0
    %142 = vmatmul.mubr.bf16.gmra.mxu0 %v103
    %v143 = vpop.f32.mrf.mxu0
    %v144 = vadd.f32 0.0, %v143
    %v145 = vpop.f32.mrf.mxu0
    %v146 = vpop.f32.mrf.mxu0
    %v147 = vadd.f32 0.0, %v146
    %v148 = vpop.f32.mrf.mxu0
    %149 = vdwg.mxu0
    %v150 = vld [vmem:[%s2] sm:$0x1]
    %v152 = vlaneseq
    %v153 = vshrl.u32 %v152, 7
    %v154 = vsub.s32 0, %v153
    %v155 = vrot.slane %v150, %v154
    %v157 = vsub.f32 %v144, %v155
    %v158 = vsub.f32 %v147, %v155
    %v159 = vand.u32 2147483647, %v157
    %v160 = vand.u32 2147483647, %v158
    %vm161 = vcmp.lt.f32.partialorder %v159, 0.5
    %vm162 = vcmp.lt.f32.partialorder %v160, 0.5
    %v163 = vsel %vm161, 1.0, 0.0
    %v164 = vsel %vm162, 1.0, 0.0
    %v165 = vpack.c.bf16 %v164, %v163
    %v166 = vld [vmem:[#allocation2] sm:$0xff]
    %v167 = vld [vmem:[#allocation2 + $0x8] sm:$0xff]
    %v168 = vld [vmem:[#allocation2 + $0x10] sm:$0xff]
    %v169 = vld [vmem:[#allocation2 + $0x18] sm:$0xff]
    %v170 = vld [vmem:[#allocation2 + $0x20] sm:$0xff]
    %v171 = vld [vmem:[#allocation2 + $0x28] sm:$0xff]
    %v172 = vld [vmem:[%s4] sm:$0x3]
    %v174 = vlaneseq
    %v175 = vshrl.u32 %v174, 7
    %v176 = vsub.s32 0, %v175
    %v177 = vrot.slane %v172, %v176
    %v178 = vlaneseq
    %v179 = vshrl.u32 %v178, 7
    %v180 = vsub.s32 1, %v179
    %v181 = vrot.slane %v172, %v180
    %v190 = vunpack.c.l.b16 %v166
    %v191 = vunpack.c.h.b16 %v166
    %v192 = vunpack.c.l.b16 %v167
    %v193 = vunpack.c.h.b16 %v167
    %v194 = vunpack.c.l.b16 %v168
    %v195 = vunpack.c.h.b16 %v168
    %v196 = vunpack.c.l.b16 %v169
    %v197 = vunpack.c.h.b16 %v169
    %v198 = vunpack.c.l.b16 %v170
    %v199 = vunpack.c.h.b16 %v170
    %v200 = vunpack.c.l.b16 %v171
    %v201 = vunpack.c.h.b16 %v171
    %v202 = vpack.c.b16 %v192, %v190
    %v203 = vpack.c.b16 %v193, %v191
    %v204 = vpack.c.b16 %v196, %v194
    %v205 = vpack.c.b16 %v197, %v195
    %v206 = vpack.c.b16 %v200, %v198
    %v207 = vpack.c.b16 %v201, %v199
    %vm214 = vcmask 392192
    %v216 = vsel %vm214, %v165, 0
    %218 = vmatprep.subr.bf16.mxu0 0
    %219 = vmatpush1.bf16.msra.mxu0 0
    %220 = vmatprep.subr.bf16.mxu0 0
    %221 = vmatpush1.bf16.msra.mxu0 0
    %222 = vmatprep.subr.bf16.mxu0 0
    %223 = vmatpush1.bf16.msra.mxu0 0
    %224 = vmatprep.subr.bf16.mxu0 0
    %225 = vmatpush1.bf16.msra.mxu0 0
    %226 = vmatprep.subr.bf16.mxu0 0
    %227 = vmatpush1.bf16.msra.mxu0 0
    %228 = vmatprep.subr.bf16.mxu0 %v207
    %229 = vmatpush1.bf16.msra.mxu0 %v206
    %230 = vmatprep.subr.bf16.mxu0 %v205
    %231 = vmatpush1.bf16.msra.mxu0 %v204
    %232 = vmatprep.subr.bf16.mxu0 %v203
    %233 = vmatpush1.bf16.msra.mxu0 %v202
    %234 = vmatprep.subr.bf16.mxu0 0
    %235 = vmatpush2.bf16.msra.mxu0 0
    %236 = vmatprep.subr.bf16.mxu0 0
    %237 = vmatpush2.bf16.msra.mxu0 0
    %238 = vmatprep.subr.bf16.mxu0 0
    %239 = vmatpush2.bf16.msra.mxu0 0
    %240 = vmatprep.subr.bf16.mxu0 0
    %241 = vmatpush2.bf16.msra.mxu0 0
    %242 = vmatprep.subr.bf16.mxu0 0
    %243 = vmatpush2.bf16.msra.mxu0 0
    %244 = vmatprep.subr.bf16.mxu0 0
    %245 = vmatpush2.bf16.msra.mxu0 0
    %246 = vmatprep.subr.bf16.mxu0 0
    %247 = vmatpush2.bf16.msra.mxu0 0
    %248 = vmatprep.subr.bf16.mxu0 0
    %249 = vmatpush2.bf16.msra.mxu0 0
    %250 = vmatprep.mubr.bf16.mxu0 0
    %251 = vmatmul.mubr.bf16.gmra.mxu0 %v216
    %v252 = vpop.f32.mrf.mxu0
    %v253 = vadd.f32 %v177, %v252
    %v254 = vpop.f32.mrf.mxu0
    %v255 = vadd.f32 %v181, %v254
    %v256 = vpop.f32.mrf.mxu0
    %v257 = vadd.f32 %v177, %v256
    %v258 = vpop.f32.mrf.mxu0
    %v259 = vadd.f32 %v181, %v258
    %260 = vdwg.mxu0
    %v261 = vmax.f32 %v253, 0.0
    %v262 = vmax.f32 %v255, 0.0
    %v263 = vmax.f32 %v257, 0.0
    %v264 = vmax.f32 %v259, 0.0
    %v265 = vpack.c.bf16 %v263, %v261
    %v266 = vpack.c.bf16 %v264, %v262
    %v267 = vld [vmem:[#allocation5] sm:$0xf]
    %v268 = vld [vmem:[#allocation5 + $0x4] sm:$0xf]
    %v269 = vld [vmem:[#allocation5 + $0x8] sm:$0xf]
    %v270 = vld [vmem:[#allocation5 + $0xc] sm:$0xf]
    %v271 = vld [vmem:[#allocation5 + $0x10] sm:$0xf]
    %v272 = vld [vmem:[#allocation5 + $0x14] sm:$0xf]
    %v273 = vld [vmem:[#allocation5 + $0x18] sm:$0xf]
    %v274 = vld [vmem:[#allocation5 + $0x1c] sm:$0xf]
    %v275 = vld [vmem:[#allocation5 + $0x20] sm:$0xf]
    %v276 = vld [vmem:[#allocation5 + $0x24] sm:$0xf]
    %v277 = vld [vmem:[#allocation5 + $0x28] sm:$0xf]
    %v278 = vld [vmem:[#allocation5 + $0x2c] sm:$0xf]
    %v279 = vld [vmem:[#allocation5 + $0x30] sm:$0xf]
    %v280 = vld [vmem:[#allocation5 + $0x34] sm:$0xf]
    %v281 = vld [vmem:[#allocation5 + $0x38] sm:$0xf]
    %v282 = vld [vmem:[#allocation5 + $0x3c] sm:$0xf]
    %v283 = vld [vmem:[#allocation5 + $0x40] sm:$0xf]
    %v284 = vld [vmem:[#allocation5 + $0x44] sm:$0xf]
    %v285 = vld [vmem:[#allocation5 + $0x48] sm:$0xf]
    %v286 = vld [vmem:[#allocation5 + $0x4c] sm:$0xf]
    %v287 = vld [vmem:[#allocation5 + $0x50] sm:$0xf]
    %v288 = vld [vmem:[#allocation5 + $0x54] sm:$0xf]
    %v289 = vld [vmem:[#allocation5 + $0x58] sm:$0xf]
    %v290 = vld [vmem:[#allocation5 + $0x5c] sm:$0xf]
    %v291 = vld [vmem:[#allocation5 + $0x60] sm:$0xf]
    %v292 = vld [vmem:[#allocation5 + $0x64] sm:$0xf]
    %v293 = vld [vmem:[#allocation5 + $0x68] sm:$0xf]
    %v294 = vld [vmem:[#allocation5 + $0x6c] sm:$0xf]
    %v295 = vld [vmem:[#allocation5 + $0x70] sm:$0xf]
    %v296 = vld [vmem:[#allocation5 + $0x74] sm:$0xf]
    %v297 = vld [vmem:[#allocation5 + $0x78] sm:$0xf]
    %v298 = vld [vmem:[#allocation5 + $0x7c] sm:$0xf]
    %v299 = vld [vmem:[%s6] sm:$0x1]
    %v301 = vlaneseq
    %v302 = vshrl.u32 %v301, 7
    %v303 = vsub.s32 0, %v302
    %v304 = vrot.slane %v299, %v303
    %v338 = vunpack.c.l.b16 %v267
    %v339 = vunpack.c.l.b16 %v268
    %v340 = vunpack.c.l.b16 %v269
    %v341 = vunpack.c.l.b16 %v270
    %v342 = vunpack.c.l.b16 %v271
    %v343 = vunpack.c.l.b16 %v272
    %v344 = vunpack.c.l.b16 %v273
    %v345 = vunpack.c.l.b16 %v274
    %v346 = vunpack.c.l.b16 %v275
    %v347 = vunpack.c.l.b16 %v276
    %v348 = vunpack.c.l.b16 %v277
    %v349 = vunpack.c.l.b16 %v278
    %v350 = vunpack.c.l.b16 %v279
    %v351 = vunpack.c.l.b16 %v280
    %v352 = vunpack.c.l.b16 %v281
    %v353 = vunpack.c.l.b16 %v282
    %v354 = vunpack.c.l.b16 %v283
    %v355 = vunpack.c.l.b16 %v284
    %v356 = vunpack.c.l.b16 %v285
    %v357 = vunpack.c.l.b16 %v286
    %v358 = vunpack.c.l.b16 %v287
    %v359 = vunpack.c.l.b16 %v288
    %v360 = vunpack.c.l.b16 %v289
    %v361 = vunpack.c.l.b16 %v290
    %v362 = vunpack.c.l.b16 %v291
    %v363 = vunpack.c.l.b16 %v292
    %v364 = vunpack.c.l.b16 %v293
    %v365 = vunpack.c.l.b16 %v294
    %v366 = vunpack.c.l.b16 %v295
    %v367 = vunpack.c.l.b16 %v296
    %v368 = vunpack.c.l.b16 %v297
    %v369 = vunpack.c.l.b16 %v298
    %v370 = vpack.c.b16 %v339, %v338
    %v371 = vpack.c.b16 %v341, %v340
    %v372 = vpack.c.b16 %v343, %v342
    %v373 = vpack.c.b16 %v345, %v344
    %v374 = vpack.c.b16 %v347, %v346
    %v375 = vpack.c.b16 %v349, %v348
    %v376 = vpack.c.b16 %v351, %v350
    %v377 = vpack.c.b16 %v353, %v352
    %v378 = vpack.c.b16 %v355, %v354
    %v379 = vpack.c.b16 %v357, %v356
    %v380 = vpack.c.b16 %v359, %v358
    %v381 = vpack.c.b16 %v361, %v360
    %v382 = vpack.c.b16 %v363, %v362
    %v383 = vpack.c.b16 %v365, %v364
    %v384 = vpack.c.b16 %v367, %v366
    %v385 = vpack.c.b16 %v369, %v368
    %402 = vmatprep.subr.bf16.mxu0 0
    %403 = vmatpush1.bf16.msra.mxu0 %v377
    %404 = vmatprep.subr.bf16.mxu0 0
    %405 = vmatpush1.bf16.msra.mxu0 %v376
    %406 = vmatprep.subr.bf16.mxu0 0
    %407 = vmatpush1.bf16.msra.mxu0 %v375
    %408 = vmatprep.subr.bf16.mxu0 0
    %409 = vmatpush1.bf16.msra.mxu0 %v374
    %410 = vmatprep.subr.bf16.mxu0 0
    %411 = vmatpush1.bf16.msra.mxu0 %v373
    %412 = vmatprep.subr.bf16.mxu0 0
    %413 = vmatpush1.bf16.msra.mxu0 %v372
    %414 = vmatprep.subr.bf16.mxu0 0
    %415 = vmatpush1.bf16.msra.mxu0 %v371
    %416 = vmatprep.subr.bf16.mxu0 0
    %417 = vmatpush1.bf16.msra.mxu0 %v370
    %418 = vmatprep.subr.bf16.mxu0 0
    %419 = vmatpush2.bf16.msra.mxu0 %v385
    %420 = vmatprep.subr.bf16.mxu0 0
    %421 = vmatpush2.bf16.msra.mxu0 %v384
    %422 = vmatprep.subr.bf16.mxu0 0
    %423 = vmatpush2.bf16.msra.mxu0 %v383
    %424 = vmatprep.subr.bf16.mxu0 0
    %425 = vmatpush2.bf16.msra.mxu0 %v382
    %426 = vmatprep.subr.bf16.mxu0 0
    %427 = vmatpush2.bf16.msra.mxu0 %v381
    %428 = vmatprep.subr.bf16.mxu0 0
    %429 = vmatpush2.bf16.msra.mxu0 %v380
    %430 = vmatprep.subr.bf16.mxu0 0
    %431 = vmatpush2.bf16.msra.mxu0 %v379
    %432 = vmatprep.subr.bf16.mxu0 0
    %433 = vmatpush2.bf16.msra.mxu0 %v378
    %434 = vmatprep.mubr.bf16.mxu0 %v266
    %435 = vmatmul.mubr.bf16.gmra.mxu0 %v265
    %v436 = vpop.f32.mrf.mxu0
    %v437 = vadd.f32 %v304, %v436
    %v438 = vpop.f32.mrf.mxu0
    %v439 = vpop.f32.mrf.mxu0
    %v440 = vadd.f32 %v304, %v439
    %v441 = vpop.f32.mrf.mxu0
    %442 = vdwg.mxu0
    %v443 = vmax.f32 %v437, 0.0
    %v444 = vmax.f32 %v440, 0.0
    %v445 = vpack.c.bf16 %v444, %v443
    %v446 = vld [vmem:[#allocation7] sm:$0xf]
    %v447 = vld [vmem:[#allocation7 + $0x4] sm:$0xf]
    %v448 = vld [vmem:[#allocation7 + $0x8] sm:$0xf]
    %v449 = vld [vmem:[#allocation7 + $0xc] sm:$0xf]
    %v450 = vld [vmem:[#allocation7 + $0x10] sm:$0xf]
    %v451 = vld [vmem:[#allocation7 + $0x14] sm:$0xf]
    %v452 = vld [vmem:[#allocation7 + $0x18] sm:$0xf]
    %v453 = vld [vmem:[#allocation7 + $0x1c] sm:$0xf]
    %v454 = vld [vmem:[#allocation7 + $0x20] sm:$0xf]
    %v455 = vld [vmem:[#allocation7 + $0x24] sm:$0xf]
    %v456 = vld [vmem:[#allocation7 + $0x28] sm:$0xf]
    %v457 = vld [vmem:[#allocation7 + $0x2c] sm:$0xf]
    %v458 = vld [vmem:[#allocation7 + $0x30] sm:$0xf]
    %v459 = vld [vmem:[#allocation7 + $0x34] sm:$0xf]
    %v460 = vld [vmem:[#allocation7 + $0x38] sm:$0xf]
    %v461 = vld [vmem:[#allocation7 + $0x3c] sm:$0xf]
    %v462 = vld [vmem:[%s8] sm:$0x1]
    %v464 = vlaneseq
    %v465 = vshrl.u32 %v464, 7
    %v466 = vsub.s32 0, %v465
    %v467 = vrot.slane %v462, %v466
    %v485 = vunpack.c.l.b16 %v446
    %v486 = vunpack.c.l.b16 %v447
    %v487 = vunpack.c.l.b16 %v448
    %v488 = vunpack.c.l.b16 %v449
    %v489 = vunpack.c.l.b16 %v450
    %v490 = vunpack.c.l.b16 %v451
    %v491 = vunpack.c.l.b16 %v452
    %v492 = vunpack.c.l.b16 %v453
    %v493 = vunpack.c.l.b16 %v454
    %v494 = vunpack.c.l.b16 %v455
    %v495 = vunpack.c.l.b16 %v456
    %v496 = vunpack.c.l.b16 %v457
    %v497 = vunpack.c.l.b16 %v458
    %v498 = vunpack.c.l.b16 %v459
    %v499 = vunpack.c.l.b16 %v460
    %v500 = vunpack.c.l.b16 %v461
    %v501 = vpack.c.b16 %v486, %v485
    %v502 = vpack.c.b16 %v488, %v487
    %v503 = vpack.c.b16 %v490, %v489
    %v504 = vpack.c.b16 %v492, %v491
    %v505 = vpack.c.b16 %v494, %v493
    %v506 = vpack.c.b16 %v496, %v495
    %v507 = vpack.c.b16 %v498, %v497
    %v508 = vpack.c.b16 %v500, %v499
    %517 = vmatprep.subr.bf16.mxu0 0
    %518 = vmatpush1.bf16.msra.mxu0 %v508
    %519 = vmatprep.subr.bf16.mxu0 0
    %520 = vmatpush1.bf16.msra.mxu0 %v507
    %521 = vmatprep.subr.bf16.mxu0 0
    %522 = vmatpush1.bf16.msra.mxu0 %v506
    %523 = vmatprep.subr.bf16.mxu0 0
    %524 = vmatpush1.bf16.msra.mxu0 %v505
    %525 = vmatprep.subr.bf16.mxu0 0
    %526 = vmatpush1.bf16.msra.mxu0 %v504
    %527 = vmatprep.subr.bf16.mxu0 0
    %528 = vmatpush1.bf16.msra.mxu0 %v503
    %529 = vmatprep.subr.bf16.mxu0 0
    %530 = vmatpush1.bf16.msra.mxu0 %v502
    %531 = vmatprep.subr.bf16.mxu0 0
    %532 = vmatpush1.bf16.msra.mxu0 %v501
    %533 = vmatprep.subr.bf16.mxu0 0
    %534 = vmatpush2.bf16.msra.mxu0 0
    %535 = vmatprep.subr.bf16.mxu0 0
    %536 = vmatpush2.bf16.msra.mxu0 0
    %537 = vmatprep.subr.bf16.mxu0 0
    %538 = vmatpush2.bf16.msra.mxu0 0
    %539 = vmatprep.subr.bf16.mxu0 0
    %540 = vmatpush2.bf16.msra.mxu0 0
    %541 = vmatprep.subr.bf16.mxu0 0
    %542 = vmatpush2.bf16.msra.mxu0 0
    %543 = vmatprep.subr.bf16.mxu0 0
    %544 = vmatpush2.bf16.msra.mxu0 0
    %545 = vmatprep.subr.bf16.mxu0 0
    %546 = vmatpush2.bf16.msra.mxu0 0
    %547 = vmatprep.subr.bf16.mxu0 0
    %548 = vmatpush2.bf16.msra.mxu0 0
    %549 = vmatprep.mubr.bf16.mxu0 0
    %550 = vmatmul.mubr.bf16.gmra.mxu0 %v445
    %v551 = vpop.f32.mrf.mxu0
    %v552 = vadd.f32 %v467, %v551
    %v553 = vpop.f32.mrf.mxu0
    %v554 = vpop.f32.mrf.mxu0
    %v555 = vadd.f32 %v467, %v554
    %v556 = vpop.f32.mrf.mxu0
    %557 = vdwg.mxu0
    %v558 = vmax.f32 %v552, 0.0
    %v559 = vmax.f32 %v555, 0.0
    %v560 = vpack.c.bf16 %v559, %v558
    %v561 = vld [vmem:[#allocation8] sm:$0xf]
    %v562 = vld [vmem:[#allocation8 + $0x4] sm:$0xf]
    %v563 = vld [vmem:[#allocation8 + $0x8] sm:$0xf]
    %v564 = vld [vmem:[#allocation8 + $0xc] sm:$0xf]
    %v565 = vld [vmem:[#allocation8 + $0x10] sm:$0xf]
    %v566 = vld [vmem:[#allocation8 + $0x14] sm:$0xf]
    %v567 = vld [vmem:[#allocation8 + $0x18] sm:$0xf]
    %v568 = vld [vmem:[#allocation8 + $0x1c] sm:$0xf]
    %v569 = vld [vmem:[#allocation8 + $0x20] sm:$0xf]
    %v570 = vld [vmem:[#allocation8 + $0x24] sm:$0xf]
    %v571 = vld [vmem:[#allocation8 + $0x28] sm:$0xf]
    %v572 = vld [vmem:[#allocation8 + $0x2c] sm:$0xf]
    %v573 = vld [vmem:[#allocation8 + $0x30] sm:$0xf]
    %v574 = vld [vmem:[#allocation8 + $0x34] sm:$0xf]
    %v575 = vld [vmem:[#allocation8 + $0x38] sm:$0xf]
    %v576 = vld [vmem:[#allocation8 + $0x3c] sm:$0xf]
    %v577 = vld [vmem:[%s10] sm:$0x1]
    %v579 = vlaneseq
    %v580 = vshrl.u32 %v579, 7
    %v581 = vsub.s32 0, %v580
    %v582 = vrot.slane %v577, %v581
    %v600 = vunpack.c.l.b16 %v561
    %v601 = vunpack.c.l.b16 %v562
    %v602 = vunpack.c.l.b16 %v563
    %v603 = vunpack.c.l.b16 %v564
    %v604 = vunpack.c.l.b16 %v565
    %v605 = vunpack.c.l.b16 %v566
    %v606 = vunpack.c.l.b16 %v567
    %v607 = vunpack.c.l.b16 %v568
    %v608 = vunpack.c.l.b16 %v569
    %v609 = vunpack.c.l.b16 %v570
    %v610 = vunpack.c.l.b16 %v571
    %v611 = vunpack.c.l.b16 %v572
    %v612 = vunpack.c.l.b16 %v573
    %v613 = vunpack.c.l.b16 %v574
    %v614 = vunpack.c.l.b16 %v575
    %v615 = vunpack.c.l.b16 %v576
    %v616 = vpack.c.b16 %v601, %v600
    %v617 = vpack.c.b16 %v603, %v602
    %v618 = vpack.c.b16 %v605, %v604
    %v619 = vpack.c.b16 %v607, %v606
    %v620 = vpack.c.b16 %v609, %v608
    %v621 = vpack.c.b16 %v611, %v610
    %v622 = vpack.c.b16 %v613, %v612
    %v623 = vpack.c.b16 %v615, %v614
    %632 = vmatprep.subr.bf16.mxu0 0
    %633 = vmatpush1.bf16.msra.mxu0 %v623
    %634 = vmatprep.subr.bf16.mxu0 0
    %635 = vmatpush1.bf16.msra.mxu0 %v622
    %636 = vmatprep.subr.bf16.mxu0 0
    %637 = vmatpush1.bf16.msra.mxu0 %v621
    %638 = vmatprep.subr.bf16.mxu0 0
    %639 = vmatpush1.bf16.msra.mxu0 %v620
    %640 = vmatprep.subr.bf16.mxu0 0
    %641 = vmatpush1.bf16.msra.mxu0 %v619
    %642 = vmatprep.subr.bf16.mxu0 0
    %643 = vmatpush1.bf16.msra.mxu0 %v618
    %644 = vmatprep.subr.bf16.mxu0 0
    %645 = vmatpush1.bf16.msra.mxu0 %v617
    %646 = vmatprep.subr.bf16.mxu0 0
    %647 = vmatpush1.bf16.msra.mxu0 %v616
    %648 = vmatprep.subr.bf16.mxu0 0
    %649 = vmatpush2.bf16.msra.mxu0 0
    %650 = vmatprep.subr.bf16.mxu0 0
    %651 = vmatpush2.bf16.msra.mxu0 0
    %652 = vmatprep.subr.bf16.mxu0 0
    %653 = vmatpush2.bf16.msra.mxu0 0
    %654 = vmatprep.subr.bf16.mxu0 0
    %655 = vmatpush2.bf16.msra.mxu0 0
    %656 = vmatprep.subr.bf16.mxu0 0
    %657 = vmatpush2.bf16.msra.mxu0 0
    %658 = vmatprep.subr.bf16.mxu0 0
    %659 = vmatpush2.bf16.msra.mxu0 0
    %660 = vmatprep.subr.bf16.mxu0 0
    %661 = vmatpush2.bf16.msra.mxu0 0
    %662 = vmatprep.subr.bf16.mxu0 0
    %663 = vmatpush2.bf16.msra.mxu0 0
    %664 = vmatprep.mubr.bf16.mxu0 0
    %665 = vmatmul.mubr.bf16.gmra.mxu0 %v560
    %v666 = vpop.f32.mrf.mxu0
    %v667 = vadd.f32 %v582, %v666
    %v668 = vpop.f32.mrf.mxu0
    %v669 = vpop.f32.mrf.mxu0
    %v670 = vadd.f32 %v582, %v669
    %v671 = vpop.f32.mrf.mxu0
    %672 = vdwg.mxu0
    %v673 = vpack.c.bf16 %v670, %v667
    %v675 = vunpack.c.l.b16 %v673
    %v676 = vunpack.c.h.b16 %v673
    %v677 = vpack.c.b16 %v675, %v675
    %v678 = vpack.c.b16 %v676, %v676
    %681 = vst [vmem:[#allocation10] sm:$0xf] %v677
    %682 = vst [vmem:[#allocation10 + $0x4] sm:$0xf] %v678
    // Predicated region
    $region62: #{tpu_custom_call.1} parent=1 // pred_check
      _
    $region63: #{tpu_custom_call.1} parent=1 // pred_check_branch
      %684 = sbr.rel (0) target = $region65
    $region64: #{tpu_custom_call.1} parent=1 // pred_region
      %s686 = ssub.s32 128, 128
      %687 = vsyncadd [#allocation4], %s686
      %s688 = sshll.u32 [#allocation10], 4
      %s689 = int_to_ptr.vmem [resolvable:$true] %s688
      %694 = dma.vmem_to_hbm [thread:$0]  %s689, 128, %s11, [#allocation4], 64, 64, 4
    $region65: #{tpu_custom_call.1} parent=1 // pred_fallthru
      _
    // Predicated region
    $region66: #{tpu_custom_call.1} parent=1 // pred_check
      _
    $region67: #{tpu_custom_call.1} parent=1 // pred_check_branch
      %696 = sbr.rel (0) target = $region69
    $region68: #{tpu_custom_call.1} parent=1 // pred_region
      %697 = dma.done [#allocation4], 128
    $region69: #{tpu_custom_call.1} parent=1 // pred_fallthru
      _
    %698 = vsyncpa [#allocation3], 1
    %699 = vsyncpa [#allocation6], 1
    %700 = vsyncpa [#allocation9], 1
    %701 = vsyncpa [#allocation4], 1

</llo_original>
